<compile_context>
chip_gen: v6e
topology: v6e:2x2x1
jax: 0.10.0
libtpu: 0.0.40
codegen_flags: <defaults>
</compile_context>

<pallas_src>
import jax
import jax.numpy as jnp
from jax.experimental import pallas as pl
from jax.experimental.pallas import tpu as pltpu


def _round_up(v, m):
    return (v + m - 1) // m * m


def _vae_fwd_kernel(x_ref, wmu_ref, wlv_ref, bmu_ref, blv_ref, wd_ref, bd_ref,
                    eps_ref, xhat_ref, mu_ref, logvar_ref):
    # ---- encode: two lane-aligned MXU matmuls (mu / log_var), f32 accumulate ----
    x = x_ref[...]
    mu = jnp.dot(x, wmu_ref[...], preferred_element_type=jnp.float32) + bmu_ref[...]
    log_var = jnp.dot(x, wlv_ref[...], preferred_element_type=jnp.float32) + blv_ref[...]

    # ---- sampling (BaseVAE.sampling): z = mu + exp(0.5 * log_var) * eps ----
    # f32 elementwise (exp on EUP); padded latent lanes stay exactly zero.
    z = mu + jnp.exp(0.5 * log_var) * eps_ref[...]

    # ---- decode: sigmoid(z @ Wd + bd) ----
    logits = jnp.dot(z.astype(wd_ref.dtype), wd_ref[...],
                     preferred_element_type=jnp.float32) + bd_ref[...]
    xhat_ref[...] = jax.nn.sigmoid(logits).astype(xhat_ref.dtype)

    mu_ref[...] = mu.astype(mu_ref.dtype)
    logvar_ref[...] = log_var.astype(logvar_ref.dtype)


def base_vae_forward(x, w_enc, b_enc, w_dec, b_dec, epsilon, *,
                     tile_b=256, compute_dtype=jnp.bfloat16):
    """(x_hat, mu, log_var) = BaseVAE.forward(x) as one batch-gridded Pallas kernel.

    x:       [B, input_dim]
    w_enc:   [input_dim, 2*latent_dim]   (columns = [mu | log_var])
    b_enc:   [2*latent_dim]
    w_dec:   [latent_dim, input_dim]
    b_dec:   [input_dim]
    epsilon: [B, latent_dim]             (reparameterization noise)
    """
    batch, input_dim = x.shape
    latent_dim = epsilon.shape[-1]
    assert w_enc.shape == (input_dim, 2 * latent_dim)
    assert b_enc.shape == (2 * latent_dim,)
    assert w_dec.shape == (latent_dim, input_dim)
    assert b_dec.shape == (input_dim,)

    f32 = jnp.float32
    # Lane-dense latent: pad latent axis to a multiple of 128 (zero padding is
    # inert: zero enc weights/bias -> log_var_pad = 0, eps_pad = 0 -> z_pad = 0,
    # and the padded decoder rows are zero).
    lp = _round_up(latent_dim, 128)
    # Batch tile: multiple of 8 sublanes, clamped to the (padded) batch.
    tile_b = max(8, min(tile_b, _round_up(batch, 8)))
    b_pad = _round_up(batch, tile_b)

    # Pre-split encoder weight into lane-aligned mu / log_var halves (bf16 MXU path).
    w_mu = jnp.zeros((input_dim, lp), compute_dtype)
    w_mu = w_mu.at[:, :latent_dim].set(w_enc[:, :latent_dim].astype(compute_dtype))
    w_lv = jnp.zeros((input_dim, lp), compute_dtype)
    w_lv = w_lv.at[:, :latent_dim].set(w_enc[:, latent_dim:].astype(compute_dtype))
    b_mu = jnp.zeros((1, lp), f32).at[:, :latent_dim].set(b_enc[:latent_dim].astype(f32))
    b_lv = jnp.zeros((1, lp), f32).at[:, :latent_dim].set(b_enc[latent_dim:].astype(f32))
    w_dec_p = jnp.zeros((lp, input_dim), compute_dtype)
    w_dec_p = w_dec_p.at[:latent_dim, :].set(w_dec.astype(compute_dtype))
    b_dec_2d = b_dec.astype(f32).reshape(1, input_dim)

    # Pad batch for the grid; matmul operands in compute_dtype, eps in f32.
    x_p = jnp.zeros((b_pad, input_dim), compute_dtype)
    x_p = x_p.at[:batch].set(x.astype(compute_dtype))
    eps_p = jnp.zeros((b_pad, lp), f32)
    eps_p = eps_p.at[:batch, :latent_dim].set(epsilon.astype(f32))

    grid = (b_pad // tile_b,)

    def row_spec(n):            # tiled along batch, pipelined / double-buffered
        return pl.BlockSpec((tile_b, n), lambda i: (i, 0))

    def const_spec(m, n):       # weights / biases: fetched once, stay resident
        return pl.BlockSpec((m, n), lambda i: (0, 0))

    out_shapes = (
        jax.ShapeDtypeStruct((b_pad, input_dim), f32),   # x_hat
        jax.ShapeDtypeStruct((b_pad, lp), f32),          # mu   (lane-dense, padded)
        jax.ShapeDtypeStruct((b_pad, lp), f32),          # log_var
    )

    x_hat, mu, log_var = pl.pallas_call(
        _vae_fwd_kernel,
        grid=grid,
        out_shape=out_shapes,
        in_specs=[
            row_spec(input_dim),            # x tile
            const_spec(input_dim, lp),      # w_mu
            const_spec(input_dim, lp),      # w_logvar
            const_spec(1, lp),              # b_mu
            const_spec(1, lp),              # b_logvar
            const_spec(lp, input_dim),      # w_dec
            const_spec(1, input_dim),       # b_dec
            row_spec(lp),                   # epsilon tile
        ],
        out_specs=(row_spec(input_dim), row_spec(lp), row_spec(lp)),
        compiler_params=pltpu.CompilerParams(
            dimension_semantics=("parallel",)),
    )(x_p, w_mu, w_lv, b_mu, b_lv, w_dec_p, b_dec_2d, eps_p)

    # Strip batch / latent padding in the wrapper (layout plumbing, not compute).
    return (x_hat[:batch],
            mu[:batch, :latent_dim],
            log_var[:batch, :latent_dim])


def _reference_forward(x, w_enc, b_enc, w_dec, b_dec, epsilon):
    x = x.astype(jnp.float32)
    h = x @ w_enc.astype(jnp.float32) + b_enc.astype(jnp.float32)
    latent_dim = epsilon.shape[-1]
    mu, log_var = h[:, :latent_dim], h[:, latent_dim:]
    z = mu + jnp.exp(0.5 * log_var) * epsilon.astype(jnp.float32)
    x_hat = jax.nn.sigmoid(z @ w_dec.astype(jnp.float32) + b_dec.astype(jnp.float32))
    return x_hat, mu, log_var


if __name__ == "__main__":
    key = jax.random.PRNGKey(0)
    batch, input_dim, latent_dim = 8, 128, 32

    k_x, k_we, k_be, k_wd, k_bd, k_eps = jax.random.split(key, 6)
    x = jax.random.normal(k_x, (batch, input_dim), dtype=jnp.float32)
    # Deterministic synthetic parameters (nn.Linear-like fan-in scaling).
    w_enc = jax.random.normal(k_we, (input_dim, 2 * latent_dim), jnp.float32) / jnp.sqrt(input_dim)
    b_enc = jax.random.normal(k_be, (2 * latent_dim,), jnp.float32) * 0.01
    w_dec = jax.random.normal(k_wd, (latent_dim, input_dim), jnp.float32) / jnp.sqrt(latent_dim)
    b_dec = jax.random.normal(k_bd, (input_dim,), jnp.float32) * 0.01
    # epsilon ~ N(0, I), drawn outside the kernel (mirrors torch.randn in sampling()).
    epsilon = jax.random.normal(k_eps, (batch, latent_dim), jnp.float32)

    ref_xhat, ref_mu, ref_lv = _reference_forward(x, w_enc, b_enc, w_dec, b_dec, epsilon)

    # --- f32 operands: tight check of the fused forward semantics ---
    xh32, mu32, lv32 = jax.block_until_ready(
        base_vae_forward(x, w_enc, b_enc, w_dec, b_dec, epsilon,
                         compute_dtype=jnp.float32))
    assert xh32.shape == (batch, input_dim)
    assert mu32.shape == (batch, latent_dim) and lv32.shape == (batch, latent_dim)
    assert jnp.allclose(xh32, ref_xhat, atol=1e-4, rtol=1e-4)
    assert jnp.allclose(mu32, ref_mu, atol=1e-4, rtol=1e-4)
    assert jnp.allclose(lv32, ref_lv, atol=1e-4, rtol=1e-4)

    # --- bf16 matmul operands (default fast path): relaxed tolerance ---
    xh16, mu16, lv16 = jax.block_until_ready(
        base_vae_forward(x, w_enc, b_enc, w_dec, b_dec, epsilon,
                         compute_dtype=jnp.bfloat16))
    assert jnp.allclose(xh16, ref_xhat, atol=1e-1)
    assert jnp.allclose(mu16, ref_mu, atol=1e-1)
    assert jnp.allclose(lv16, ref_lv, atol=1e-1)

    print("KERNEL_OK")
</pallas_src>

<mosaic_0001>
module attributes {stable_mosaic.version = 11 : i64} {
  func.func @_vae_fwd_kernel(%arg0: i32, %arg1: memref<8x128xf32, #tpu.memory_space<vmem>>, %arg2: memref<128x128xf32, #tpu.memory_space<vmem>>, %arg3: memref<128x128xf32, #tpu.memory_space<vmem>>, %arg4: memref<1x128xf32, #tpu.memory_space<vmem>>, %arg5: memref<1x128xf32, #tpu.memory_space<vmem>>, %arg6: memref<128x128xf32, #tpu.memory_space<vmem>>, %arg7: memref<1x128xf32, #tpu.memory_space<vmem>>, %arg8: memref<8x128xf32, #tpu.memory_space<vmem>>, %arg9: memref<8x128xf32, #tpu.memory_space<vmem>>, %arg10: memref<8x128xf32, #tpu.memory_space<vmem>>, %arg11: memref<8x128xf32, #tpu.memory_space<vmem>>) attributes {dimension_semantics = [#tpu.dimension_semantics<parallel>], iteration_bounds = array<i64: 1>, scalar_prefetch = 0 : i64, scratch_operands = 0 : i64, tpu.core_type = #tpu.core_type<tc>, window_params = [{transform_indices = @transform_0, window_bounds = array<i64: 8, 128>}, {pipeline_mode = #tpu.pipeline_mode<synchronous>, transform_indices = @transform_1, window_bounds = array<i64: 128, 128>}, {pipeline_mode = #tpu.pipeline_mode<synchronous>, transform_indices = @transform_2, window_bounds = array<i64: 128, 128>}, {pipeline_mode = #tpu.pipeline_mode<synchronous>, transform_indices = @transform_3, window_bounds = array<i64: 1, 128>}, {pipeline_mode = #tpu.pipeline_mode<synchronous>, transform_indices = @transform_4, window_bounds = array<i64: 1, 128>}, {pipeline_mode = #tpu.pipeline_mode<synchronous>, transform_indices = @transform_5, window_bounds = array<i64: 128, 128>}, {pipeline_mode = #tpu.pipeline_mode<synchronous>, transform_indices = @transform_6, window_bounds = array<i64: 1, 128>}, {transform_indices = @transform_7, window_bounds = array<i64: 8, 128>}, {transform_indices = @transform_8, window_bounds = array<i64: 8, 128>}, {transform_indices = @transform_9, window_bounds = array<i64: 8, 128>}, {transform_indices = @transform_10, window_bounds = array<i64: 8, 128>}]} {
    %c0 = arith.constant 0 : index
    %c0_0 = arith.constant 0 : index
    %0 = vector.load %arg1[%c0, %c0_0] : memref<8x128xf32, #tpu.memory_space<vmem>>, vector<8x128xf32>
    %c0_1 = arith.constant 0 : index
    %c0_2 = arith.constant 0 : index
    %1 = vector.load %arg2[%c0_1, %c0_2] : memref<128x128xf32, #tpu.memory_space<vmem>>, vector<128x128xf32>
    %cst = arith.constant dense<0.000000e+00> : vector<8x128xf32>
    %2 = tpu.matmul %0, %1, %cst {dimension_numbers = #tpu.dot_dimension_numbers<[1], [0], [0], [1], [0, 0, 1, 1], [], []>} : vector<8x128xf32>, vector<128x128xf32>, vector<8x128xf32> -> vector<8x128xf32>
    %c0_3 = arith.constant 0 : index
    %c0_4 = arith.constant 0 : index
    %3 = vector.load %arg4[%c0_3, %c0_4] : memref<1x128xf32, #tpu.memory_space<vmem>>, vector<1x128xf32>
    %4 = vector.broadcast %3 : vector<1x128xf32> to vector<8x128xf32>
    %5 = arith.addf %2, %4 : vector<8x128xf32>
    %c0_5 = arith.constant 0 : index
    %c0_6 = arith.constant 0 : index
    %6 = vector.load %arg3[%c0_5, %c0_6] : memref<128x128xf32, #tpu.memory_space<vmem>>, vector<128x128xf32>
    %cst_7 = arith.constant dense<0.000000e+00> : vector<8x128xf32>
    %7 = tpu.matmul %0, %6, %cst_7 {dimension_numbers = #tpu.dot_dimension_numbers<[1], [0], [0], [1], [0, 0, 1, 1], [], []>} : vector<8x128xf32>, vector<128x128xf32>, vector<8x128xf32> -> vector<8x128xf32>
    %c0_8 = arith.constant 0 : index
    %c0_9 = arith.constant 0 : index
    %8 = vector.load %arg5[%c0_8, %c0_9] : memref<1x128xf32, #tpu.memory_space<vmem>>, vector<1x128xf32>
    %9 = vector.broadcast %8 : vector<1x128xf32> to vector<8x128xf32>
    %10 = arith.addf %7, %9 : vector<8x128xf32>
    %cst_10 = arith.constant 5.000000e-01 : f32
    %11 = vector.broadcast %cst_10 : f32 to vector<8x128xf32>
    %12 = arith.mulf %11, %10 : vector<8x128xf32>
    %13 = math.exp %12 : vector<8x128xf32>
    %c0_11 = arith.constant 0 : index
    %c0_12 = arith.constant 0 : index
    %14 = vector.load %arg8[%c0_11, %c0_12] : memref<8x128xf32, #tpu.memory_space<vmem>>, vector<8x128xf32>
    %15 = arith.mulf %13, %14 : vector<8x128xf32>
    %16 = arith.addf %5, %15 : vector<8x128xf32>
    %c0_13 = arith.constant 0 : index
    %c0_14 = arith.constant 0 : index
    %17 = vector.load %arg6[%c0_13, %c0_14] : memref<128x128xf32, #tpu.memory_space<vmem>>, vector<128x128xf32>
    %cst_15 = arith.constant dense<0.000000e+00> : vector<8x128xf32>
    %18 = tpu.matmul %16, %17, %cst_15 {dimension_numbers = #tpu.dot_dimension_numbers<[1], [0], [0], [1], [0, 0, 1, 1], [], []>} : vector<8x128xf32>, vector<128x128xf32>, vector<8x128xf32> -> vector<8x128xf32>
    %c0_16 = arith.constant 0 : index
    %c0_17 = arith.constant 0 : index
    %19 = vector.load %arg7[%c0_16, %c0_17] : memref<1x128xf32, #tpu.memory_space<vmem>>, vector<1x128xf32>
    %20 = vector.broadcast %19 : vector<1x128xf32> to vector<8x128xf32>
    %21 = arith.addf %18, %20 : vector<8x128xf32>
    %22 = arith.negf %21 : vector<8x128xf32>
    %23 = math.exp %22 : vector<8x128xf32>
    %cst_18 = arith.constant 1.000000e+00 : f32
    %24 = vector.broadcast %cst_18 : f32 to vector<8x128xf32>
    %25 = arith.addf %24, %23 : vector<8x128xf32>
    %26 = arith.divf %24, %25 : vector<8x128xf32>
    %c0_19 = arith.constant 0 : index
    %c0_20 = arith.constant 0 : index
    %27 = vector.load %arg9[%c0_19, %c0_20] : memref<8x128xf32, #tpu.memory_space<vmem>>, vector<8x128xf32>
    tpu.vector_store %arg9[%c0_19, %c0_20], %26 {strides = array<i32>} : memref<8x128xf32, #tpu.memory_space<vmem>>, vector<8x128xf32>,
    %c0_21 = arith.constant 0 : index
    %c0_22 = arith.constant 0 : index
    %28 = vector.load %arg10[%c0_21, %c0_22] : memref<8x128xf32, #tpu.memory_space<vmem>>, vector<8x128xf32>
    tpu.vector_store %arg10[%c0_21, %c0_22], %5 {strides = array<i32>} : memref<8x128xf32, #tpu.memory_space<vmem>>, vector<8x128xf32>,
    %c0_23 = arith.constant 0 : index
    %c0_24 = arith.constant 0 : index
    %29 = vector.load %arg11[%c0_23, %c0_24] : memref<8x128xf32, #tpu.memory_space<vmem>>, vector<8x128xf32>
    tpu.vector_store %arg11[%c0_23, %c0_24], %10 {strides = array<i32>} : memref<8x128xf32, #tpu.memory_space<vmem>>, vector<8x128xf32>,
    return
  }
  func.func @transform_0(%arg0: i32) -> (i32, i32) {
    %c0_i32 = arith.constant 0 : i32
    %c0_i32_0 = arith.constant 0 : i32
    return %arg0, %c0_i32 : i32, i32
  }
  func.func @transform_1(%arg0: i32) -> (i32, i32) {
    %c0_i32 = arith.constant 0 : i32
    %c0_i32_0 = arith.constant 0 : i32
    %c0_i32_1 = arith.constant 0 : i32
    return %c0_i32, %c0_i32_0 : i32, i32
  }
  func.func @transform_2(%arg0: i32) -> (i32, i32) {
    %c0_i32 = arith.constant 0 : i32
    %c0_i32_0 = arith.constant 0 : i32
    %c0_i32_1 = arith.constant 0 : i32
    return %c0_i32, %c0_i32_0 : i32, i32
  }
  func.func @transform_3(%arg0: i32) -> (i32, i32) {
    %c0_i32 = arith.constant 0 : i32
    %c0_i32_0 = arith.constant 0 : i32
    %c0_i32_1 = arith.constant 0 : i32
    return %c0_i32, %c0_i32_0 : i32, i32
  }
  func.func @transform_4(%arg0: i32) -> (i32, i32) {
    %c0_i32 = arith.constant 0 : i32
    %c0_i32_0 = arith.constant 0 : i32
    %c0_i32_1 = arith.constant 0 : i32
    return %c0_i32, %c0_i32_0 : i32, i32
  }
  func.func @transform_5(%arg0: i32) -> (i32, i32) {
    %c0_i32 = arith.constant 0 : i32
    %c0_i32_0 = arith.constant 0 : i32
    %c0_i32_1 = arith.constant 0 : i32
    return %c0_i32, %c0_i32_0 : i32, i32
  }
  func.func @transform_6(%arg0: i32) -> (i32, i32) {
    %c0_i32 = arith.constant 0 : i32
    %c0_i32_0 = arith.constant 0 : i32
    %c0_i32_1 = arith.constant 0 : i32
    return %c0_i32, %c0_i32_0 : i32, i32
  }
  func.func @transform_7(%arg0: i32) -> (i32, i32) {
    %c0_i32 = arith.constant 0 : i32
    %c0_i32_0 = arith.constant 0 : i32
    return %arg0, %c0_i32 : i32, i32
  }
  func.func @transform_8(%arg0: i32) -> (i32, i32) {
    %c0_i32 = arith.constant 0 : i32
    %c0_i32_0 = arith.constant 0 : i32
    return %arg0, %c0_i32 : i32, i32
  }
  func.func @transform_9(%arg0: i32) -> (i32, i32) {
    %c0_i32 = arith.constant 0 : i32
    %c0_i32_0 = arith.constant 0 : i32
    return %arg0, %c0_i32 : i32, i32
  }
  func.func @transform_10(%arg0: i32) -> (i32, i32) {
    %c0_i32 = arith.constant 0 : i32
    %c0_i32_0 = arith.constant 0 : i32
    return %arg0, %c0_i32 : i32, i32
  }
}

</mosaic_0001>

<llo_original>
// kernel: tpu_custom_call.1
$region0: #{tpu_custom_call.1}
  #allocation0 [shape = 'u32[]', space=smem, size = 0x4, offset = 0x4, fixed_abs, tag = 'smem constant byte address 0x4 - core index']
  #allocation1 [shape = 'u32[144,128]{1,0:T(1,128)}', space=vmem, size = 0x12000, scoped, tag = 'internal scratch']
  %s0 = inlined_call_operand.hbm [shape: f32[8,128], index: 0, kind: input, shape index: {}]
  %s1 = inlined_call_operand.hbm [shape: f32[128,128], index: 1, kind: input, shape index: {}]
  %s2 = inlined_call_operand.hbm [shape: f32[128,128], index: 2, kind: input, shape index: {}]
  %s3 = inlined_call_operand.vmem [shape: f32[1,128], index: 3, kind: input, shape index: {}]
  %s4 = inlined_call_operand.vmem [shape: f32[1,128], index: 4, kind: input, shape index: {}]
  %s5 = inlined_call_operand.hbm [shape: f32[128,128], index: 5, kind: input, shape index: {}]
  %s6 = inlined_call_operand.vmem [shape: f32[1,128], index: 6, kind: input, shape index: {}]
  %s7 = inlined_call_operand.vmem [shape: f32[8,128], index: 7, kind: input, shape index: {}]
  %s8 = inlined_call_operand.hbm [shape: f32[8,128], index: 8, kind: output, shape index: {0}]
  %s9 = inlined_call_operand.hbm [shape: f32[8,128], index: 9, kind: output, shape index: {1}]
  %s10 = inlined_call_operand.hbm [shape: f32[8,128], index: 10, kind: output, shape index: {2}]
  %11 = xla_tuple %s8, %s9, %s10
  %s12 = sld [smem:[#allocation0]]
  $region74: #{tpu_custom_call.1} parent=0
    _
  %s14 = ssub.s32 1, %s12
  %s15 = scalar_select 0, %s14, %s12
  $region1: #{tpu_custom_call.1} parent=0
    #allocation2 [shape = 'u8[4096]{0}', space=vmem, size = 0x1000, scoped, tag = 'input window, operand 0, single buffered']
    #allocation3 [shape = 's32[1]{0}', space=sflag, size = 0x4, scoped, tag = 'scoped memory for tpu_custom_call.1']
    #allocation4 [shape = 's32[1]{0}', space=sflag, size = 0x4, scoped, tag = 'scoped memory for tpu_custom_call.1']
    #allocation5 [shape = 'u8[65536]{0}', space=vmem, size = 0x10000, scoped, tag = 'input window, operand 1, single buffered']
    #allocation6 [shape = 's32[1]{0}', space=sflag, size = 0x4, scoped, tag = 'scoped memory for tpu_custom_call.1']
    #allocation7 [shape = 'u8[65536]{0}', space=vmem, size = 0x10000, scoped, tag = 'input window, operand 2, single buffered']
    #allocation8 [shape = 'u8[65536]{0}', space=vmem, size = 0x10000, scoped, tag = 'input window, operand 5, single buffered']
    #allocation9 [shape = 's32[1]{0}', space=sflag, size = 0x4, scoped, tag = 'scoped memory for tpu_custom_call.1']
    #allocation10 [shape = 'u8[4096]{0}', space=vmem, size = 0x1000, scoped, tag = 'output window, operand 0, single buffered']
    #allocation11 [shape = 'u8[4096]{0}', space=vmem, size = 0x1000, scoped, tag = 'output window, operand 1, single buffered']
    #allocation12 [shape = 's32[1]{0}', space=sflag, size = 0x4, scoped, tag = 'scoped memory for tpu_custom_call.1']
    #allocation13 [shape = 'u8[4096]{0}', space=vmem, size = 0x1000, scoped, tag = 'output window, operand 2, single buffered']
    %16 = vsyncpa [#allocation3], 0
    %17 = vsyncpa [#allocation6], 0
    %18 = vsyncpa [#allocation9], 0
    %19 = vsyncpa [#allocation4], 0
    %20 = vsyncpa [#allocation12], 0
    // Predicated region
    $region2: #{tpu_custom_call.1} parent=1 // pred_check
      _
    $region3: #{tpu_custom_call.1} parent=1 // pred_check_branch
      %22 = sbr.rel (0) target = $region5
    $region4: #{tpu_custom_call.1} parent=1 // pred_region
      %s24 = ssub.s32 128, 128
      %25 = vsyncadd [#allocation3], %s24
      %s27 = sshll.u32 [#allocation2], 4
      %s28 = int_to_ptr.vmem [resolvable:$true] %s27
      %30 = dma.hbm_to_vmem [thread:$0]  %s0, 128, %s28, [#allocation3]
    $region5: #{tpu_custom_call.1} parent=1 // pred_fallthru
      _
    // Predicated region
    $region6: #{tpu_custom_call.1} parent=1 // pred_check
      _
    $region7: #{tpu_custom_call.1} parent=1 // pred_check_branch
      %32 = sbr.rel (0) target = $region9
    $region8: #{tpu_custom_call.1} parent=1 // pred_region
      %s34 = ssub.s32 2048, 2048
      %35 = vsyncadd [#allocation6], %s34
      %s36 = sshll.u32 [#allocation5], 4
      %s37 = int_to_ptr.vmem [resolvable:$true] %s36
      %42 = dma.hbm_to_vmem [thread:$0]  %s1, 2048, %s37, [#allocation6], 128, 128, 8
    $region9: #{tpu_custom_call.1} parent=1 // pred_fallthru
      _
    // Predicated region
    $region10: #{tpu_custom_call.1} parent=1 // pred_check
      _
    $region11: #{tpu_custom_call.1} parent=1 // pred_check_branch
      %44 = sbr.rel (0) target = $region13
    $region12: #{tpu_custom_call.1} parent=1 // pred_region
      %s46 = ssub.s32 2048, 2048
      %47 = vsyncadd [#allocation6], %s46
      %s48 = sshll.u32 [#allocation7], 4
      %s49 = int_to_ptr.vmem [resolvable:$true] %s48
      %54 = dma.hbm_to_vmem [thread:$0]  %s2, 2048, %s49, [#allocation6], 128, 128, 8
    $region13: #{tpu_custom_call.1} parent=1 // pred_fallthru
      _
    // Predicated region
    $region14: #{tpu_custom_call.1} parent=1 // pred_check
      _
    $region15: #{tpu_custom_call.1} parent=1 // pred_check_branch
      %56 = sbr.rel (0) target = $region17
    $region16: #{tpu_custom_call.1} parent=1 // pred_region
      _
    $region17: #{tpu_custom_call.1} parent=1 // pred_fallthru
      _
    // Predicated region
    $region18: #{tpu_custom_call.1} parent=1 // pred_check
      _
    $region19: #{tpu_custom_call.1} parent=1 // pred_check_branch
      %58 = sbr.rel (0) target = $region21
    $region20: #{tpu_custom_call.1} parent=1 // pred_region
      _
    $region21: #{tpu_custom_call.1} parent=1 // pred_fallthru
      _
    // Predicated region
    $region22: #{tpu_custom_call.1} parent=1 // pred_check
      _
    $region23: #{tpu_custom_call.1} parent=1 // pred_check_branch
      %60 = sbr.rel (0) target = $region25
    $region24: #{tpu_custom_call.1} parent=1 // pred_region
      %s62 = ssub.s32 2048, 2048
      %63 = vsyncadd [#allocation9], %s62
      %s64 = sshll.u32 [#allocation8], 4
      %s65 = int_to_ptr.vmem [resolvable:$true] %s64
      %70 = dma.hbm_to_vmem [thread:$0]  %s5, 2048, %s65, [#allocation9], 128, 128, 8
    $region25: #{tpu_custom_call.1} parent=1 // pred_fallthru
      _
    // Predicated region
    $region26: #{tpu_custom_call.1} parent=1 // pred_check
      _
    $region27: #{tpu_custom_call.1} parent=1 // pred_check_branch
      %72 = sbr.rel (0) target = $region29
    $region28: #{tpu_custom_call.1} parent=1 // pred_region
      _
    $region29: #{tpu_custom_call.1} parent=1 // pred_fallthru
      _
    // Predicated region
    $region30: #{tpu_custom_call.1} parent=1 // pred_check
      _
    $region31: #{tpu_custom_call.1} parent=1 // pred_check_branch
      %74 = sbr.rel (0) target = $region33
    $region32: #{tpu_custom_call.1} parent=1 // pred_region
      _
    $region33: #{tpu_custom_call.1} parent=1 // pred_fallthru
      _
    // Predicated region
    $region34: #{tpu_custom_call.1} parent=1 // pred_check
      _
    $region35: #{tpu_custom_call.1} parent=1 // pred_check_branch
      %76 = sbr.rel (0) target = $region37
    $region36: #{tpu_custom_call.1} parent=1 // pred_region
      %77 = dma.done [#allocation3], 128
    $region37: #{tpu_custom_call.1} parent=1 // pred_fallthru
      _
    // Predicated region
    $region38: #{tpu_custom_call.1} parent=1 // pred_check
      _
    $region39: #{tpu_custom_call.1} parent=1 // pred_check_branch
      %79 = sbr.rel (0) target = $region41
    $region40: #{tpu_custom_call.1} parent=1 // pred_region
      %80 = dma.done [#allocation6], 2048
    $region41: #{tpu_custom_call.1} parent=1 // pred_fallthru
      _
    // Predicated region
    $region42: #{tpu_custom_call.1} parent=1 // pred_check
      _
    $region43: #{tpu_custom_call.1} parent=1 // pred_check_branch
      %82 = sbr.rel (0) target = $region45
    $region44: #{tpu_custom_call.1} parent=1 // pred_region
      %83 = dma.done [#allocation6], 2048
    $region45: #{tpu_custom_call.1} parent=1 // pred_fallthru
      _
    // Predicated region
    $region46: #{tpu_custom_call.1} parent=1 // pred_check
      _
    $region47: #{tpu_custom_call.1} parent=1 // pred_check_branch
      %85 = sbr.rel (0) target = $region49
    $region48: #{tpu_custom_call.1} parent=1 // pred_region
      %86 = dma.done [#allocation9], 2048
    $region49: #{tpu_custom_call.1} parent=1 // pred_fallthru
      _
    %v87 = vld [vmem:[#allocation2] sm:$0xff]
    %v88 = vld [vmem:[#allocation5] sm:$0xff]
    %v89 = vld [vmem:[#allocation5 + $0x8] sm:$0xff]
    %v90 = vld [vmem:[#allocation5 + $0x10] sm:$0xff]
    %v91 = vld [vmem:[#allocation5 + $0x18] sm:$0xff]
    %v92 = vld [vmem:[#allocation5 + $0x20] sm:$0xff]
    %v93 = vld [vmem:[#allocation5 + $0x28] sm:$0xff]
    %v94 = vld [vmem:[#allocation5 + $0x30] sm:$0xff]
    %v95 = vld [vmem:[#allocation5 + $0x38] sm:$0xff]
    %v96 = vld [vmem:[#allocation5 + $0x40] sm:$0xff]
    %v97 = vld [vmem:[#allocation5 + $0x48] sm:$0xff]
    %v98 = vld [vmem:[#allocation5 + $0x50] sm:$0xff]
    %v99 = vld [vmem:[#allocation5 + $0x58] sm:$0xff]
    %v100 = vld [vmem:[#allocation5 + $0x60] sm:$0xff]
    %v101 = vld [vmem:[#allocation5 + $0x68] sm:$0xff]
    %v102 = vld [vmem:[#allocation5 + $0x70] sm:$0xff]
    %v103 = vld [vmem:[#allocation5 + $0x78] sm:$0xff]
    %v104 = vld [vmem:[%s3] sm:$0x1]
    %v106 = vlaneseq
    %v107 = vshrl.u32 %v106, 7
    %v108 = vsub.s32 0, %v107
    %v109 = vrot.slane %v104, %v108
    %111 = vmatprep.subr.mxu0 0.0
    %112 = vmatpush1.msra.mxu0 %v103
    %113 = vmatprep.subr.mxu0 0.0
    %114 = vmatpush1.msra.mxu0 %v102
    %115 = vmatprep.subr.mxu0 0.0
    %116 = vmatpush1.msra.mxu0 %v101
    %117 = vmatprep.subr.mxu0 0.0
    %118 = vmatpush1.msra.mxu0 %v100
    %119 = vmatprep.subr.mxu0 0.0
    %120 = vmatpush1.msra.mxu0 %v99
    %121 = vmatprep.subr.mxu0 0.0
    %122 = vmatpush1.msra.mxu0 %v98
    %123 = vmatprep.subr.mxu0 0.0
    %124 = vmatpush1.msra.mxu0 %v97
    %125 = vmatprep.subr.mxu0 0.0
    %126 = vmatpush1.msra.mxu0 %v96
    %127 = vmatprep.subr.mxu0 0.0
    %128 = vmatpush1.msra.mxu0 %v95
    %129 = vmatprep.subr.mxu0 0.0
    %130 = vmatpush1.msra.mxu0 %v94
    %131 = vmatprep.subr.mxu0 0.0
    %132 = vmatpush1.msra.mxu0 %v93
    %133 = vmatprep.subr.mxu0 0.0
    %134 = vmatpush1.msra.mxu0 %v92
    %135 = vmatprep.subr.mxu0 0.0
    %136 = vmatpush1.msra.mxu0 %v91
    %137 = vmatprep.subr.mxu0 0.0
    %138 = vmatpush1.msra.mxu0 %v90
    %139 = vmatprep.subr.mxu0 0.0
    %140 = vmatpush1.msra.mxu0 %v89
    %141 = vmatprep.subr.mxu0 0.0
    %142 = vmatpush1.msra.mxu0 %v88
    %143 = vmatprep.subr.mxu0 0.0
    %144 = vmatpush2.msra.mxu0 0.0
    %145 = vmatprep.subr.mxu0 0.0
    %146 = vmatpush2.msra.mxu0 0.0
    %147 = vmatprep.subr.mxu0 0.0
    %148 = vmatpush2.msra.mxu0 0.0
    %149 = vmatprep.subr.mxu0 0.0
    %150 = vmatpush2.msra.mxu0 0.0
    %151 = vmatprep.subr.mxu0 0.0
    %152 = vmatpush2.msra.mxu0 0.0
    %153 = vmatprep.subr.mxu0 0.0
    %154 = vmatpush2.msra.mxu0 0.0
    %155 = vmatprep.subr.mxu0 0.0
    %156 = vmatpush2.msra.mxu0 0.0
    %157 = vmatprep.subr.mxu0 0.0
    %158 = vmatpush2.msra.mxu0 0.0
    %159 = vmatprep.subr.mxu0 0.0
    %160 = vmatpush2.msra.mxu0 0.0
    %161 = vmatprep.subr.mxu0 0.0
    %162 = vmatpush2.msra.mxu0 0.0
    %163 = vmatprep.subr.mxu0 0.0
    %164 = vmatpush2.msra.mxu0 0.0
    %165 = vmatprep.subr.mxu0 0.0
    %166 = vmatpush2.msra.mxu0 0.0
    %167 = vmatprep.subr.mxu0 0.0
    %168 = vmatpush2.msra.mxu0 0.0
    %169 = vmatprep.subr.mxu0 0.0
    %170 = vmatpush2.msra.mxu0 0.0
    %171 = vmatprep.subr.mxu0 0.0
    %172 = vmatpush2.msra.mxu0 0.0
    %173 = vmatprep.subr.mxu0 0.0
    %174 = vmatpush2.msra.mxu0 0.0
    %175 = vmatprep.mubr.f32.mxu0 0.0
    %176 = vmatmul.mubr.f32.gmra.mxu0 %v87
    %v177 = vpop.f32.mrf.mxu0
    %v178 = vadd.f32 %v109, %v177
    %v179 = vpop.f32.mrf.mxu0
    %180 = vdwg.mxu0
    %v181 = vld [vmem:[#allocation7] sm:$0xff]
    %v182 = vld [vmem:[#allocation7 + $0x8] sm:$0xff]
    %v183 = vld [vmem:[#allocation7 + $0x10] sm:$0xff]
    %v184 = vld [vmem:[#allocation7 + $0x18] sm:$0xff]
    %v185 = vld [vmem:[#allocation7 + $0x20] sm:$0xff]
    %v186 = vld [vmem:[#allocation7 + $0x28] sm:$0xff]
    %v187 = vld [vmem:[#allocation7 + $0x30] sm:$0xff]
    %v188 = vld [vmem:[#allocation7 + $0x38] sm:$0xff]
    %v189 = vld [vmem:[#allocation7 + $0x40] sm:$0xff]
    %v190 = vld [vmem:[#allocation7 + $0x48] sm:$0xff]
    %v191 = vld [vmem:[#allocation7 + $0x50] sm:$0xff]
    %v192 = vld [vmem:[#allocation7 + $0x58] sm:$0xff]
    %v193 = vld [vmem:[#allocation7 + $0x60] sm:$0xff]
    %v194 = vld [vmem:[#allocation7 + $0x68] sm:$0xff]
    %v195 = vld [vmem:[#allocation7 + $0x70] sm:$0xff]
    %v196 = vld [vmem:[#allocation7 + $0x78] sm:$0xff]
    %v197 = vld [vmem:[%s4] sm:$0x1]
    %v199 = vlaneseq
    %v200 = vshrl.u32 %v199, 7
    %v201 = vsub.s32 0, %v200
    %v202 = vrot.slane %v197, %v201
    %204 = vmatprep.subr.mxu0 0.0
    %205 = vmatpush1.msra.mxu0 %v196
    %206 = vmatprep.subr.mxu0 0.0
    %207 = vmatpush1.msra.mxu0 %v195
    %208 = vmatprep.subr.mxu0 0.0
    %209 = vmatpush1.msra.mxu0 %v194
    %210 = vmatprep.subr.mxu0 0.0
    %211 = vmatpush1.msra.mxu0 %v193
    %212 = vmatprep.subr.mxu0 0.0
    %213 = vmatpush1.msra.mxu0 %v192
    %214 = vmatprep.subr.mxu0 0.0
    %215 = vmatpush1.msra.mxu0 %v191
    %216 = vmatprep.subr.mxu0 0.0
    %217 = vmatpush1.msra.mxu0 %v190
    %218 = vmatprep.subr.mxu0 0.0
    %219 = vmatpush1.msra.mxu0 %v189
    %220 = vmatprep.subr.mxu0 0.0
    %221 = vmatpush1.msra.mxu0 %v188
    %222 = vmatprep.subr.mxu0 0.0
    %223 = vmatpush1.msra.mxu0 %v187
    %224 = vmatprep.subr.mxu0 0.0
    %225 = vmatpush1.msra.mxu0 %v186
    %226 = vmatprep.subr.mxu0 0.0
    %227 = vmatpush1.msra.mxu0 %v185
    %228 = vmatprep.subr.mxu0 0.0
    %229 = vmatpush1.msra.mxu0 %v184
    %230 = vmatprep.subr.mxu0 0.0
    %231 = vmatpush1.msra.mxu0 %v183
    %232 = vmatprep.subr.mxu0 0.0
    %233 = vmatpush1.msra.mxu0 %v182
    %234 = vmatprep.subr.mxu0 0.0
    %235 = vmatpush1.msra.mxu0 %v181
    %236 = vmatprep.subr.mxu0 0.0
    %237 = vmatpush2.msra.mxu0 0.0
    %238 = vmatprep.subr.mxu0 0.0
    %239 = vmatpush2.msra.mxu0 0.0
    %240 = vmatprep.subr.mxu0 0.0
    %241 = vmatpush2.msra.mxu0 0.0
    %242 = vmatprep.subr.mxu0 0.0
    %243 = vmatpush2.msra.mxu0 0.0
    %244 = vmatprep.subr.mxu0 0.0
    %245 = vmatpush2.msra.mxu0 0.0
    %246 = vmatprep.subr.mxu0 0.0
    %247 = vmatpush2.msra.mxu0 0.0
    %248 = vmatprep.subr.mxu0 0.0
    %249 = vmatpush2.msra.mxu0 0.0
    %250 = vmatprep.subr.mxu0 0.0
    %251 = vmatpush2.msra.mxu0 0.0
    %252 = vmatprep.subr.mxu0 0.0
    %253 = vmatpush2.msra.mxu0 0.0
    %254 = vmatprep.subr.mxu0 0.0
    %255 = vmatpush2.msra.mxu0 0.0
    %256 = vmatprep.subr.mxu0 0.0
    %257 = vmatpush2.msra.mxu0 0.0
    %258 = vmatprep.subr.mxu0 0.0
    %259 = vmatpush2.msra.mxu0 0.0
    %260 = vmatprep.subr.mxu0 0.0
    %261 = vmatpush2.msra.mxu0 0.0
    %262 = vmatprep.subr.mxu0 0.0
    %263 = vmatpush2.msra.mxu0 0.0
    %264 = vmatprep.subr.mxu0 0.0
    %265 = vmatpush2.msra.mxu0 0.0
    %266 = vmatprep.subr.mxu0 0.0
    %267 = vmatpush2.msra.mxu0 0.0
    %268 = vmatprep.mubr.f32.mxu0 0.0
    %269 = vmatmul.mubr.f32.gmra.mxu0 %v87
    %v270 = vpop.f32.mrf.mxu0
    %v271 = vadd.f32 %v202, %v270
    %v272 = vpop.f32.mrf.mxu0
    %273 = vdwg.mxu0
    %v274 = vmul.f32 %v271, 0.5
    %v275 = vmul.f32 %v274, 1.442695
    %v276 = vpow.pop %v275
    %v277 = vld [vmem:[%s7] sm:$0xff]
    %v278 = vmul.f32 %v276, %v277
    %v279 = vadd.f32 %v178, %v278
    %v280 = vld [vmem:[#allocation8] sm:$0xff]
    %v281 = vld [vmem:[#allocation8 + $0x8] sm:$0xff]
    %v282 = vld [vmem:[#allocation8 + $0x10] sm:$0xff]
    %v283 = vld [vmem:[#allocation8 + $0x18] sm:$0xff]
    %v284 = vld [vmem:[#allocation8 + $0x20] sm:$0xff]
    %v285 = vld [vmem:[#allocation8 + $0x28] sm:$0xff]
    %v286 = vld [vmem:[#allocation8 + $0x30] sm:$0xff]
    %v287 = vld [vmem:[#allocation8 + $0x38] sm:$0xff]
    %v288 = vld [vmem:[#allocation8 + $0x40] sm:$0xff]
    %v289 = vld [vmem:[#allocation8 + $0x48] sm:$0xff]
    %v290 = vld [vmem:[#allocation8 + $0x50] sm:$0xff]
    %v291 = vld [vmem:[#allocation8 + $0x58] sm:$0xff]
    %v292 = vld [vmem:[#allocation8 + $0x60] sm:$0xff]
    %v293 = vld [vmem:[#allocation8 + $0x68] sm:$0xff]
    %v294 = vld [vmem:[#allocation8 + $0x70] sm:$0xff]
    %v295 = vld [vmem:[#allocation8 + $0x78] sm:$0xff]
    %v296 = vld [vmem:[%s6] sm:$0x1]
    %v298 = vlaneseq
    %v299 = vshrl.u32 %v298, 7
    %v300 = vsub.s32 0, %v299
    %v301 = vrot.slane %v296, %v300
    %303 = vmatprep.subr.mxu0 0.0
    %304 = vmatpush1.msra.mxu0 %v295
    %305 = vmatprep.subr.mxu0 0.0
    %306 = vmatpush1.msra.mxu0 %v294
    %307 = vmatprep.subr.mxu0 0.0
    %308 = vmatpush1.msra.mxu0 %v293
    %309 = vmatprep.subr.mxu0 0.0
    %310 = vmatpush1.msra.mxu0 %v292
    %311 = vmatprep.subr.mxu0 0.0
    %312 = vmatpush1.msra.mxu0 %v291
    %313 = vmatprep.subr.mxu0 0.0
    %314 = vmatpush1.msra.mxu0 %v290
    %315 = vmatprep.subr.mxu0 0.0
    %316 = vmatpush1.msra.mxu0 %v289
    %317 = vmatprep.subr.mxu0 0.0
    %318 = vmatpush1.msra.mxu0 %v288
    %319 = vmatprep.subr.mxu0 0.0
    %320 = vmatpush1.msra.mxu0 %v287
    %321 = vmatprep.subr.mxu0 0.0
    %322 = vmatpush1.msra.mxu0 %v286
    %323 = vmatprep.subr.mxu0 0.0
    %324 = vmatpush1.msra.mxu0 %v285
    %325 = vmatprep.subr.mxu0 0.0
    %326 = vmatpush1.msra.mxu0 %v284
    %327 = vmatprep.subr.mxu0 0.0
    %328 = vmatpush1.msra.mxu0 %v283
    %329 = vmatprep.subr.mxu0 0.0
    %330 = vmatpush1.msra.mxu0 %v282
    %331 = vmatprep.subr.mxu0 0.0
    %332 = vmatpush1.msra.mxu0 %v281
    %333 = vmatprep.subr.mxu0 0.0
    %334 = vmatpush1.msra.mxu0 %v280
    %335 = vmatprep.subr.mxu0 0.0
    %336 = vmatpush2.msra.mxu0 0.0
    %337 = vmatprep.subr.mxu0 0.0
    %338 = vmatpush2.msra.mxu0 0.0
    %339 = vmatprep.subr.mxu0 0.0
    %340 = vmatpush2.msra.mxu0 0.0
    %341 = vmatprep.subr.mxu0 0.0
    %342 = vmatpush2.msra.mxu0 0.0
    %343 = vmatprep.subr.mxu0 0.0
    %344 = vmatpush2.msra.mxu0 0.0
    %345 = vmatprep.subr.mxu0 0.0
    %346 = vmatpush2.msra.mxu0 0.0
    %347 = vmatprep.subr.mxu0 0.0
    %348 = vmatpush2.msra.mxu0 0.0
    %349 = vmatprep.subr.mxu0 0.0
    %350 = vmatpush2.msra.mxu0 0.0
    %351 = vmatprep.subr.mxu0 0.0
    %352 = vmatpush2.msra.mxu0 0.0
    %353 = vmatprep.subr.mxu0 0.0
    %354 = vmatpush2.msra.mxu0 0.0
    %355 = vmatprep.subr.mxu0 0.0
    %356 = vmatpush2.msra.mxu0 0.0
    %357 = vmatprep.subr.mxu0 0.0
    %358 = vmatpush2.msra.mxu0 0.0
    %359 = vmatprep.subr.mxu0 0.0
    %360 = vmatpush2.msra.mxu0 0.0
    %361 = vmatprep.subr.mxu0 0.0
    %362 = vmatpush2.msra.mxu0 0.0
    %363 = vmatprep.subr.mxu0 0.0
    %364 = vmatpush2.msra.mxu0 0.0
    %365 = vmatprep.subr.mxu0 0.0
    %366 = vmatpush2.msra.mxu0 0.0
    %367 = vmatprep.mubr.f32.mxu0 0.0
    %368 = vmatmul.mubr.f32.gmra.mxu0 %v279
    %v369 = vpop.f32.mrf.mxu0
    %v370 = vadd.f32 %v301, %v369
    %v371 = vpop.f32.mrf.mxu0
    %372 = vdwg.mxu0
    %v373 = vxor.u32 %v370, 2147483648
    %v374 = vmul.f32 %v373, 1.442695
    %v375 = vpow.pop %v374
    %v376 = vadd.f32 %v375, 1.0
    %v377 = vrcp.pop %v376
    %v378 = vmul.f32 1.0, %v377
    %379 = vst [vmem:[#allocation10] sm:$0xff] %v378
    %380 = vst [vmem:[#allocation11] sm:$0xff] %v178
    %381 = vst [vmem:[#allocation13] sm:$0xff] %v271
    // Predicated region
    $region50: #{tpu_custom_call.1} parent=1 // pred_check
      _
    $region51: #{tpu_custom_call.1} parent=1 // pred_check_branch
      %383 = sbr.rel (0) target = $region53
    $region52: #{tpu_custom_call.1} parent=1 // pred_region
      %s385 = ssub.s32 128, 128
      %386 = vsyncadd [#allocation4], %s385
      %s388 = sshll.u32 [#allocation10], 4
      %s389 = int_to_ptr.vmem [resolvable:$true] %s388
      %391 = dma.vmem_to_hbm [thread:$0]  %s389, 128, %s8, [#allocation4]
    $region53: #{tpu_custom_call.1} parent=1 // pred_fallthru
      _
    // Predicated region
    $region54: #{tpu_custom_call.1} parent=1 // pred_check
      _
    $region55: #{tpu_custom_call.1} parent=1 // pred_check_branch
      %393 = sbr.rel (0) target = $region57
    $region56: #{tpu_custom_call.1} parent=1 // pred_region
      %s395 = ssub.s32 128, 128
      %396 = vsyncadd [#allocation12], %s395
      %s398 = sshll.u32 [#allocation11], 4
      %s399 = int_to_ptr.vmem [resolvable:$true] %s398
      %401 = dma.vmem_to_hbm [thread:$0]  %s399, 128, %s9, [#allocation12]
    $region57: #{tpu_custom_call.1} parent=1 // pred_fallthru
      _
    // Predicated region
    $region58: #{tpu_custom_call.1} parent=1 // pred_check
      _
    $region59: #{tpu_custom_call.1} parent=1 // pred_check_branch
      %403 = sbr.rel (0) target = $region61
    $region60: #{tpu_custom_call.1} parent=1 // pred_region
      %s405 = ssub.s32 128, 128
      %406 = vsyncadd [#allocation12], %s405
      %s408 = sshll.u32 [#allocation13], 4
      %s409 = int_to_ptr.vmem [resolvable:$true] %s408
      %411 = dma.vmem_to_hbm [thread:$0]  %s409, 128, %s10, [#allocation12]
    $region61: #{tpu_custom_call.1} parent=1 // pred_fallthru
      _
    // Predicated region
    $region62: #{tpu_custom_call.1} parent=1 // pred_check
      _
    $region63: #{tpu_custom_call.1} parent=1 // pred_check_branch
      %413 = sbr.rel (0) target = $region65
    $region64: #{tpu_custom_call.1} parent=1 // pred_region
      %414 = dma.done [#allocation4], 128
    $region65: #{tpu_custom_call.1} parent=1 // pred_fallthru
      _
    // Predicated region
    $region66: #{tpu_custom_call.1} parent=1 // pred_check
      _
    $region67: #{tpu_custom_call.1} parent=1 // pred_check_branch
      %416 = sbr.rel (0) target = $region69
    $region68: #{tpu_custom_call.1} parent=1 // pred_region
      %417 = dma.done [#allocation12], 128
    $region69: #{tpu_custom_call.1} parent=1 // pred_fallthru
      _
    // Predicated region
    $region70: #{tpu_custom_call.1} parent=1 // pred_check
      _
    $region71: #{tpu_custom_call.1} parent=1 // pred_check_branch
      %419 = sbr.rel (0) target = $region73
    $region72: #{tpu_custom_call.1} parent=1 // pred_region
      %420 = dma.done [#allocation12], 128
    $region73: #{tpu_custom_call.1} parent=1 // pred_fallthru
      _
    %421 = vsyncpa [#allocation3], 1
    %422 = vsyncpa [#allocation6], 1
    %423 = vsyncpa [#allocation9], 1
    %424 = vsyncpa [#allocation4], 1
    %425 = vsyncpa [#allocation12], 1

</llo_original>
